<compile_context>
chip_gen: v5e
topology: v5e:2x2
jax: 0.10.0
libtpu: 0.0.40
codegen_flags: <defaults>
</compile_context>

<pallas_src>
import functools
import math

import jax
import jax.numpy as jnp
from jax import lax
from jax.experimental import pallas as pl
from jax.experimental.pallas import tpu as pltpu

LANE = 128  # lane width; all feature dims are padded to this


# ------------------------------ in-kernel math ------------------------------

def _masked_layernorm(x, n_true, eps=1e-5):
    """LayerNorm over the first `n_true` lanes of the last dim (rest = zero pad).

    Matches torch.nn.LayerNorm (biased variance, elementwise_affine=False).
    Padded lanes come out as exact zeros.
    """
    lanes = lax.broadcasted_iota(jnp.int32, x.shape, x.ndim - 1)
    mask = (lanes < n_true).astype(x.dtype)
    inv_n = jnp.float32(1.0 / n_true)
    mean = jnp.sum(x * mask, axis=-1, keepdims=True) * inv_n
    d = (x - mean) * mask
    var = jnp.sum(d * d, axis=-1, keepdims=True) * inv_n
    return d * lax.rsqrt(var + eps)


def _gelu_exact(x):
    # torch.nn.GELU() default (exact, erf-based).
    # TODO(synk): tanh-approx GELU would move this onto the EUP slot if tolerance permits.
    return 0.5 * x * (1.0 + lax.erf(x * jnp.float32(0.7071067811865476)))


# --------------------------------- kernels ----------------------------------

def _transform0_kernel(x_ref, w0_ref, o_ref, *, f_in):
    """h0w = LayerNorm_in(x) @ W0   (row-tiled over nodes, lane-dense)."""
    x = x_ref[...].astype(jnp.float32)
    xh = _masked_layernorm(x, f_in)
    h = jnp.dot(xh, w0_ref[...], preferred_element_type=jnp.float32)
    o_ref[...] = h.astype(o_ref.dtype)


def _agg0_trans1_kernel(adj_ref, hw_ref, b0_ref, w1_ref, o_ref, acc_ref, *, f_hid):
    """acc = sum_k A[i,k] @ h0w[k];  finalize: GELU(LN(acc + b0)) @ W1."""
    k = pl.program_id(1)

    @pl.when(k == 0)
    def _():
        acc_ref[...] = jnp.zeros_like(acc_ref)

    acc_ref[...] += jnp.dot(adj_ref[...], hw_ref[...],
                            preferred_element_type=jnp.float32)

    @pl.when(k == pl.num_programs(1) - 1)
    def _():
        h = acc_ref[...] + b0_ref[...]                    # GCN0 output (f32)
        h = _gelu_exact(_masked_layernorm(h, f_hid))      # Trans block (f32)
        h = jnp.dot(h, w1_ref[...], preferred_element_type=jnp.float32)
        o_ref[...] = h.astype(o_ref.dtype)                # bf16 operand for next agg


def _agg1_logsoftmax_kernel(adj_ref, hw_ref, b1_ref, o_ref, acc_ref, *, f_out):
    """acc = sum_k A[i,k] @ h1w[k];  finalize: log_softmax(acc + b1) over true lanes."""
    k = pl.program_id(1)

    @pl.when(k == 0)
    def _():
        acc_ref[...] = jnp.zeros_like(acc_ref)

    acc_ref[...] += jnp.dot(adj_ref[...], hw_ref[...],
                            preferred_element_type=jnp.float32)

    @pl.when(k == pl.num_programs(1) - 1)
    def _():
        o = acc_ref[...] + b1_ref[...]
        lanes = lax.broadcasted_iota(jnp.int32, o.shape, o.ndim - 1)
        valid = lanes < f_out
        m = jnp.max(jnp.where(valid, o, jnp.float32(-1e30)), axis=-1, keepdims=True)
        z = o - m
        e = jnp.where(valid, jnp.exp(z), 0.0)
        lse = jnp.log(jnp.sum(e, axis=-1, keepdims=True))
        o_ref[...] = jnp.where(valid, z - lse, 0.0).astype(o_ref.dtype)


# --------------------------------- wrapper -----------------------------------

def _pad2(a, rows, cols):
    return jnp.pad(a, ((0, rows - a.shape[0]), (0, cols - a.shape[1])))


def _compiler_params(tile_m, tile_k, semantics):
    # VMEM budget derived from the chosen tiles (double-buffered inputs/outputs
    # + f32 accumulator), with headroom; capped at 32 MiB so it fits the
    # default scoped VMEM on every chip (v7x physical VMEM is only 64 MiB).
    est = (2 * tile_m * tile_k * 2        # adj tile, bf16, double-buffered
           + 2 * tile_k * LANE * 2        # source feature tile, bf16, dbl-buffered
           + 2 * tile_m * LANE * 4        # output tile, double-buffered
           + 2 * LANE * LANE * 4          # weights
           + 2 * LANE * 4                 # bias
           + tile_m * LANE * 4)           # f32 accumulator
    limit = int(min(max(4 * est, 8 << 20), 32 << 20))
    return pltpu.CompilerParams(dimension_semantics=semantics,
                                vmem_limit_bytes=limit)


def model_forward(x, adj_norm, w0, b0, w1, b1, *, tile_m=256, tile_k=512,
                  agg_dtype=jnp.bfloat16):
    """Fused forward pass of Model.fwd_lin (2 GCN layers) as 3 Pallas kernels."""
    n, f_in = x.shape
    f_hid = w0.shape[1]
    f_out = w1.shape[1]

    # Clamp tiles to the (128-padded) problem size, keep alignment constraints:
    # adjacency block is (tile_m, tile_k) -> tile_m % 8 == 0, tile_k % 128 == 0.
    n128 = pl.cdiv(n, LANE) * LANE
    tile_m = min(tile_m, n128)
    tile_k = min(tile_k, n128)
    assert tile_m % 8 == 0 and tile_k % LANE == 0

    n_pad = pl.cdiv(n128, math.lcm(tile_m, tile_k)) * math.lcm(tile_m, tile_k)
    n_tiles_m = n_pad // tile_m
    n_tiles_k = n_pad // tile_k

    # Lane-dense zero padding (feature dims -> 128 lanes, nodes -> tile multiple).
    x_p = _pad2(x.astype(jnp.float32), n_pad, LANE)
    adj_p = _pad2(adj_norm, n_pad, n_pad).astype(agg_dtype)
    w0_p = _pad2(w0, LANE, LANE)
    w1_p = _pad2(w1, LANE, LANE)
    b0_p = _pad2(b0.reshape(1, -1), 1, LANE)
    b1_p = _pad2(b1.reshape(1, -1), 1, LANE)

    row_spec = pl.BlockSpec((tile_m, LANE), lambda i: (i, 0))
    w_spec_1d = pl.BlockSpec((LANE, LANE), lambda i: (0, 0))

    # --- kernel A: h0w = LayerNorm_in(x) @ W0 -------------------------------
    h0w = pl.pallas_call(
        functools.partial(_transform0_kernel, f_in=f_in),
        out_shape=jax.ShapeDtypeStruct((n_pad, LANE), agg_dtype),
        grid_spec=pltpu.PrefetchScalarGridSpec(
            num_scalar_prefetch=0,
            grid=(n_tiles_m,),
            in_specs=[row_spec, w_spec_1d],
            out_specs=row_spec),
        compiler_params=_compiler_params(tile_m, LANE, ("parallel",)),
        cost_estimate=pl.CostEstimate(
            flops=2 * n_pad * LANE * LANE,
            transcendentals=n_pad,
            bytes_accessed=n_pad * LANE * 4 + LANE * LANE * 4 + n_pad * LANE * 2),
    )(x_p, w0_p)

    # Aggregation specs: grid = (dest row tile i, source/reduction tile k), k last.
    adj_spec = pl.BlockSpec((tile_m, tile_k), lambda i, k: (i, k))
    src_spec = pl.BlockSpec((tile_k, LANE), lambda i, k: (k, 0))
    dst_spec = pl.BlockSpec((tile_m, LANE), lambda i, k: (i, 0))
    bias_spec = pl.BlockSpec((1, LANE), lambda i, k: (0, 0))
    w_spec = pl.BlockSpec((LANE, LANE), lambda i, k: (0, 0))

    agg_flops = 2 * n_pad * n_pad * LANE + 2 * n_pad * LANE * LANE
    agg_bytes = (n_pad * n_pad * 2                    # adjacency (read once)
                 + n_tiles_m * n_pad * LANE * 2       # source features, re-read per i
                 + n_pad * LANE * 4)                  # output

    # --- kernel B: h1w = GELU(LayerNorm(A @ h0w + b0)) @ W1 -----------------
    h1w = pl.pallas_call(
        functools.partial(_agg0_trans1_kernel, f_hid=f_hid),
        out_shape=jax.ShapeDtypeStruct((n_pad, LANE), agg_dtype),
        grid_spec=pltpu.PrefetchScalarGridSpec(
            num_scalar_prefetch=0,
            grid=(n_tiles_m, n_tiles_k),
            in_specs=[adj_spec, src_spec, bias_spec, w_spec],
            out_specs=dst_spec,
            scratch_shapes=[pltpu.VMEM((tile_m, LANE), jnp.float32)]),
        compiler_params=_compiler_params(tile_m, tile_k, ("parallel", "arbitrary")),
        cost_estimate=pl.CostEstimate(
            flops=agg_flops, transcendentals=2 * n_pad * LANE,
            bytes_accessed=agg_bytes),
    )(adj_p, h0w, b0_p, w1_p)

    # --- kernel C: out = log_softmax(A @ h1w + b1, dim=1) -------------------
    out_p = pl.pallas_call(
        functools.partial(_agg1_logsoftmax_kernel, f_out=f_out),
        out_shape=jax.ShapeDtypeStruct((n_pad, LANE), jnp.float32),
        grid_spec=pltpu.PrefetchScalarGridSpec(
            num_scalar_prefetch=0,
            grid=(n_tiles_m, n_tiles_k),
            in_specs=[adj_spec, src_spec, bias_spec],
            out_specs=dst_spec,
            scratch_shapes=[pltpu.VMEM((tile_m, LANE), jnp.float32)]),
        compiler_params=_compiler_params(tile_m, tile_k, ("parallel", "arbitrary")),
        cost_estimate=pl.CostEstimate(
            flops=agg_flops, transcendentals=n_pad * LANE,
            bytes_accessed=agg_bytes),
    )(adj_p, h1w, b1_p)

    return out_p[:n, :f_out]


# ----------------------------- host-side helpers -----------------------------

def build_normalized_adj(edge_index, num_nodes):
    """Dense symmetric adjacency + exactly one self-loop, symmetric norm."""
    src, dst = edge_index
    a = jnp.zeros((num_nodes, num_nodes), jnp.float32)
    a = a.at[src, dst].set(1.0)
    a = jnp.maximum(a, a.T)                        # force undirected
    eye = jnp.eye(num_nodes, dtype=jnp.float32)
    a = a * (1.0 - eye) + eye                      # dedup self-loops -> diagonal == 1
    deg = jnp.sum(a, axis=1)
    d_inv_sqrt = lax.rsqrt(deg)
    return a * d_inv_sqrt[:, None] * d_inv_sqrt[None, :]


def reference_forward(x, adj, w0, b0, w1, b1):
    """Pure-JAX f32 reference of Model.fwd_lin for correctness checking."""
    def ln(v, eps=1e-5):
        m = jnp.mean(v, axis=-1, keepdims=True)
        var = jnp.mean((v - m) ** 2, axis=-1, keepdims=True)
        return (v - m) * lax.rsqrt(var + eps)

    def gelu(v):
        return 0.5 * v * (1.0 + lax.erf(v * jnp.float32(0.7071067811865476)))

    h = adj @ (ln(x) @ w0) + b0
    h = gelu(ln(h))
    o = adj @ (h @ w1) + b1
    m = jnp.max(o, axis=1, keepdims=True)
    z = o - m
    return z - jnp.log(jnp.sum(jnp.exp(z), axis=1, keepdims=True))


if __name__ == "__main__":
    # Small but grid-exercising problem: N=500 nodes (padded to 512 -> 4x2 tile
    # grid at tile_m=128, tile_k=256), in=8 feats, hidden=32, out=4 classes.
    N, F_IN, F_HID, F_OUT = 500, 8, 32, 4

    key = jax.random.PRNGKey(0)
    k_x, k_w0, k_b0, k_w1, k_b1 = jax.random.split(key, 5)

    x = jax.random.normal(k_x, (N, F_IN), jnp.float32)

    # Ring graph edge_index (undirected).
    idx = jnp.arange(N)
    edge_index = jnp.stack([idx, (idx + 1) % N], axis=0)
    adj = build_normalized_adj(edge_index, N)

    # Deterministic parameters (GCN weights + biases).
    w0 = jax.random.normal(k_w0, (F_IN, F_HID), jnp.float32) * 0.1
    b0 = jax.random.normal(k_b0, (1, F_HID), jnp.float32) * 0.01
    w1 = jax.random.normal(k_w1, (F_HID, F_OUT), jnp.float32) * 0.1
    b1 = jax.random.normal(k_b1, (1, F_OUT), jnp.float32) * 0.01

    out = model_forward(x, adj, w0, b0, w1, b1, tile_m=128, tile_k=256)
    out = jax.block_until_ready(out)

    ref = reference_forward(x, adj, w0, b0, w1, b1)

    assert out.shape == (N, F_OUT)
    assert bool(jnp.all(jnp.isfinite(out)))
    # log_softmax rows must sum to ~1 in prob space.
    assert bool(jnp.allclose(jnp.sum(jnp.exp(out), axis=1), 1.0, atol=1e-4))
    # match the f32 reference (bf16 aggregation operands -> small tolerance).
    max_err = float(jnp.max(jnp.abs(out - ref)))
    assert max_err < 5e-2, f"max abs err vs reference too large: {max_err}"

    print("KERNEL_OK")
</pallas_src>

<mosaic_0001>
module attributes {stable_mosaic.version = 11 : i64} {
  func.func @_transform0_kernel(%arg0: i32, %arg1: memref<128x128xf32, #tpu.memory_space<vmem>>, %arg2: memref<128x128xf32, #tpu.memory_space<vmem>>, %arg3: memref<128x128xbf16, #tpu.memory_space<vmem>>) attributes {dimension_semantics = [#tpu.dimension_semantics<parallel>], iteration_bounds = array<i64: 4>, scalar_prefetch = 0 : i64, scratch_operands = 0 : i64, tpu.core_type = #tpu.core_type<tc>, window_params = [{transform_indices = @transform_0, window_bounds = array<i64: 128, 128>}, {pipeline_mode = #tpu.pipeline_mode<synchronous>, transform_indices = @transform_1, window_bounds = array<i64: 128, 128>}, {transform_indices = @transform_2, window_bounds = array<i64: 128, 128>}]} {
    %c0 = arith.constant 0 : index
    %c0_0 = arith.constant 0 : index
    %0 = vector.load %arg1[%c0, %c0_0] : memref<128x128xf32, #tpu.memory_space<vmem>>, vector<128x128xf32>
    %1 = tpu.iota {dimensions = array<i32: 1>} : vector<128x128xi32>
    %c8_i32 = arith.constant 8 : i32
    %2 = vector.broadcast %c8_i32 : i32 to vector<128x128xi32>
    %3 = arith.cmpi slt, %1, %2 : vector<128x128xi32>
    %4 = arith.extui %3 : vector<128x128xi1> to vector<128x128xi32>
    %5 = arith.sitofp %4 : vector<128x128xi32> to vector<128x128xf32>
    %6 = arith.mulf %0, %5 : vector<128x128xf32>
    %cst = arith.constant dense<0.000000e+00> : vector<128xf32>
    %7 = vector.multi_reduction <add>, %6, %cst [1] : vector<128x128xf32> to vector<128xf32>
    %8 = vector.shape_cast %7 : vector<128xf32> to vector<128x1xf32>
    %cst_1 = arith.constant 1.250000e-01 : f32
    %9 = vector.broadcast %cst_1 : f32 to vector<128x1xf32>
    %10 = arith.mulf %8, %9 : vector<128x1xf32>
    %11 = vector.broadcast %10 : vector<128x1xf32> to vector<128x128xf32>
    %12 = arith.subf %0, %11 : vector<128x128xf32>
    %13 = arith.mulf %12, %5 : vector<128x128xf32>
    %14 = arith.mulf %13, %13 : vector<128x128xf32>
    %cst_2 = arith.constant dense<0.000000e+00> : vector<128xf32>
    %15 = vector.multi_reduction <add>, %14, %cst_2 [1] : vector<128x128xf32> to vector<128xf32>
    %16 = vector.shape_cast %15 : vector<128xf32> to vector<128x1xf32>
    %cst_3 = arith.constant 1.250000e-01 : f32
    %17 = vector.broadcast %cst_3 : f32 to vector<128x1xf32>
    %18 = arith.mulf %16, %17 : vector<128x1xf32>
    %cst_4 = arith.constant 9.99999974E-6 : f32
    %19 = vector.broadcast %cst_4 : f32 to vector<128x1xf32>
    %20 = arith.addf %18, %19 : vector<128x1xf32>
    %21 = math.rsqrt %20 : vector<128x1xf32>
    %22 = vector.broadcast %21 : vector<128x1xf32> to vector<128x128xf32>
    %23 = arith.mulf %13, %22 : vector<128x128xf32>
    %c0_5 = arith.constant 0 : index
    %c0_6 = arith.constant 0 : index
    %24 = vector.load %arg2[%c0_5, %c0_6] : memref<128x128xf32, #tpu.memory_space<vmem>>, vector<128x128xf32>
    %cst_7 = arith.constant dense<0.000000e+00> : vector<128x128xf32>
    %25 = tpu.matmul %23, %24, %cst_7 {dimension_numbers = #tpu.dot_dimension_numbers<[1], [0], [0], [1], [0, 0, 1, 1], [], []>} : vector<128x128xf32>, vector<128x128xf32>, vector<128x128xf32> -> vector<128x128xf32>
    %26 = arith.truncf %25 : vector<128x128xf32> to vector<128x128xbf16>
    %c0_8 = arith.constant 0 : index
    %c0_9 = arith.constant 0 : index
    %27 = vector.load %arg3[%c0_8, %c0_9] : memref<128x128xbf16, #tpu.memory_space<vmem>>, vector<128x128xbf16>
    tpu.vector_store %arg3[%c0_8, %c0_9], %26 {strides = array<i32>} : memref<128x128xbf16, #tpu.memory_space<vmem>>, vector<128x128xbf16>,
    return
  }
  func.func @transform_0(%arg0: i32) -> (i32, i32) {
    %c0_i32 = arith.constant 0 : i32
    %c0_i32_0 = arith.constant 0 : i32
    return %arg0, %c0_i32 : i32, i32
  }
  func.func @transform_1(%arg0: i32) -> (i32, i32) {
    %c0_i32 = arith.constant 0 : i32
    %c0_i32_0 = arith.constant 0 : i32
    %c0_i32_1 = arith.constant 0 : i32
    return %c0_i32, %c0_i32_0 : i32, i32
  }
  func.func @transform_2(%arg0: i32) -> (i32, i32) {
    %c0_i32 = arith.constant 0 : i32
    %c0_i32_0 = arith.constant 0 : i32
    return %arg0, %c0_i32 : i32, i32
  }
}

</mosaic_0001>

<llo_original>
// kernel: tpu_custom_call.1
$region0: #{tpu_custom_call.1}
  #allocation0 [shape = 'u32[]', space=smem, size = 0x4, offset = 0x4, fixed_abs, tag = 'smem constant byte address 0x4 - core index']
  #allocation1 [shape = 'u32[72,128]{1,0:T(1,128)}', space=vmem, size = 0x9000, scoped, tag = 'internal scratch']
  %s0 = inlined_call_operand.hbm [shape: f32[512,128], index: 0, kind: input, shape index: {}]
  %s1 = inlined_call_operand.hbm [shape: f32[128,128], index: 1, kind: input, shape index: {}]
  %s2 = inlined_call_operand.hbm [shape: bf16[512,128], index: 2, kind: output, shape index: {}]
  %s3 = sld [smem:[#allocation0]]
  $region49: #{tpu_custom_call.1} parent=0
    _
  %s5 = ssub.s32 1, %s3
  %s6 = scalar_select 0, %s5, %s3
  $region1: #{tpu_custom_call.1} parent=0
    #allocation2 [shape = 'u8[131072]{0}', space=vmem, size = 0x20000, scoped, tag = 'input window, operand 0']
    #allocation3 [shape = 's32[2]{0}', space=sflag, size = 0x8, scoped, tag = 'scoped memory for tpu_custom_call.1']
    #allocation4 [shape = 's32[2]{0}', space=sflag, size = 0x8, scoped, tag = 'scoped memory for tpu_custom_call.1']
    #allocation5 [shape = 'u8[65536]{0}', space=vmem, size = 0x10000, scoped, tag = 'input window, operand 1, single buffered']
    #allocation6 [shape = 's32[1]{0}', space=sflag, size = 0x4, scoped, tag = 'scoped memory for tpu_custom_call.1']
    #allocation7 [shape = 'u8[65536]{0}', space=vmem, size = 0x10000, scoped, tag = 'output window, operand 0']
    %7 = vsyncpa [#allocation3], 0
    %s8 = scalar_lea.sflag [#allocation3], 1
    %9 = vsyncpa %s8, 0
    %10 = vsyncpa [#allocation6], 0
    %11 = vsyncpa [#allocation4], 0
    %s12 = scalar_lea.sflag [#allocation4], 1
    %13 = vsyncpa %s12, 0
    loop: start=0, step=1, limit=6
    $region2: #{tpu_custom_call.1} parent=1 // loop_pre_header
      _
    $region3: #{tpu_custom_call.1} parent=1 // loop_header
      %s15 = sphi 0, %s19
      %p16 = scmp.ge.s32.totalorder %s15, 6
      %s25 = sphi 0, %s27
      %s28 = sphi 0, %s25
      %s29 = sphi 0, %s28
      %s45 = sphi 0, %s29
      %s49 = sphi 0, %s49
      %s51 = sphi 0, %s49
      %s52 = sphi 0, %s51
      %s66 = sphi 0, %s52
      %s72 = sphi 0, %s74
      %s75 = sphi 0, %s72
      %s76 = sphi 0, %s75
      %s92 = sphi 0, %s76
    $region4: #{tpu_custom_call.1} parent=1 // loop_header_branch
      %18 = sbr.rel (%p16) target = $region8
    $region5: #{tpu_custom_call.1} parent=1 // loop_body
      %s20 = ssub.s32 %s15, 1
      %s21 = ssub.s32 %s15, 2
      %s22 = sadd.s32 %s15, 1
      %s23 = ssub.s32 %s15, %s22
      %p24 = scmp.eq.s32.totalorder %s23, 0
      %s26 = sadd.s32 %s25, 1
      %s27 = scalar_select %p24, %s25, %s26
      %p30 = pneg %p24
      %p31 = scmp.eq.s32.totalorder %s15, 3
      %p32 = por %p30, %p31
      %p33 = scmp.ne.s32.totalorder %s25, %s28
      %p34 = scmp.eq.s32.totalorder %s15, 0
      %p35 = por %p33, %p34
      %p36 = scmp.ne.s32.totalorder %s25, %s28
      %p37 = scmp.eq.s32.totalorder %s20, 3
      %p38 = por %p36, %p37
      %p39 = scmp.ne.s32.totalorder %s28, %s29
      %p40 = scmp.eq.s32.totalorder %s20, 0
      %p41 = por %p39, %p40
      %p42 = scmp.ne.s32.totalorder %s28, %s29
      %p43 = scmp.eq.s32.totalorder %s21, 3
      %p44 = por %p42, %p43
      %p46 = scmp.ne.s32.totalorder %s29, %s45
      %p47 = scmp.eq.s32.totalorder %s21, 0
      %p48 = por %p46, %p47
      %s50 = sadd.s32 %s49, 1
      %p53 = scmp.eq.s32.totalorder %s15, 3
      %p54 = scmp.ne.s32.totalorder %s49, %s51
      %p55 = scmp.eq.s32.totalorder %s15, 0
      %p56 = por %p54, %p55
      %p57 = scmp.ne.s32.totalorder %s49, %s51
      %p58 = scmp.eq.s32.totalorder %s20, 3
      %p59 = por %p57, %p58
      %p60 = scmp.ne.s32.totalorder %s51, %s52
      %p61 = scmp.eq.s32.totalorder %s20, 0
      %p62 = por %p60, %p61
      %p63 = scmp.ne.s32.totalorder %s51, %s52
      %p64 = scmp.eq.s32.totalorder %s21, 3
      %p65 = por %p63, %p64
      %p67 = scmp.ne.s32.totalorder %s52, %s66
      %p68 = scmp.eq.s32.totalorder %s21, 0
      %p69 = por %p67, %p68
      %s70 = ssub.s32 %s15, %s22
      %p71 = scmp.eq.s32.totalorder %s70, 0
      %s73 = sadd.s32 %s72, 1
      %s74 = scalar_select %p71, %s72, %s73
      %p77 = pneg %p71
      %p78 = scmp.eq.s32.totalorder %s15, 3
      %p79 = por %p77, %p78
      %p80 = scmp.ne.s32.totalorder %s72, %s75
      %p81 = scmp.eq.s32.totalorder %s15, 0
      %p82 = por %p80, %p81
      %p83 = scmp.ne.s32.totalorder %s72, %s75
      %p84 = scmp.eq.s32.totalorder %s20, 3
      %p85 = por %p83, %p84
      %p86 = scmp.ne.s32.totalorder %s75, %s76
      %p87 = scmp.eq.s32.totalorder %s20, 0
      %p88 = por %p86, %p87
      %p89 = scmp.ne.s32.totalorder %s75, %s76
      %p90 = scmp.eq.s32.totalorder %s21, 3
      %p91 = por %p89, %p90
      %p93 = scmp.ne.s32.totalorder %s76, %s92
      %p94 = scmp.eq.s32.totalorder %s21, 0
      %p95 = por %p93, %p94
      %p96 = scmp.le.s32.totalorder 1, %s15
      %p97 = scmp.lt.s32.totalorder %s15, 5
      %p98 = pnand %p96, %p97
      %p99 = pneg %p98
      // Predicated region
      $region9: #{tpu_custom_call.1} parent=5 // pred_check
        _
      $region10: #{tpu_custom_call.1} parent=5 // pred_check_branch
        %101 = sbr.rel (%p98) target = $region12
      $region11: #{tpu_custom_call.1} parent=5 // pred_region
        %s102 = ssub.s32 %s15, 1
        // Predicated region
        $region13: #{tpu_custom_call.1} parent=11 // pred_check
          %p103 = pneg %p62
        $region14: #{tpu_custom_call.1} parent=11 // pred_check_branch
          %105 = sbr.rel (%p103) target = $region16
        $region15: #{tpu_custom_call.1} parent=11 // pred_region
          %107 = vsyncadd [#allocation6], 0
          %s108 = sshll.u32 %s1, 4
          %s109 = int_to_ptr.hbm [resolvable:$true] %s108
          %s110 = sshll.u32 [#allocation5], 4
          %s111 = int_to_ptr.vmem [resolvable:$true] %s110
          %116 = dma.hbm_to_vmem [thread:$0]  %s109, 2048, %s111, [#allocation6], 128, 128, 8
        $region16: #{tpu_custom_call.1} parent=11 // pred_fallthru
          _
      $region12: #{tpu_custom_call.1} parent=5 // pred_fallthru
        _
      %p117 = scmp.lt.s32.totalorder %s15, 4
      // Predicated region
      $region17: #{tpu_custom_call.1} parent=5 // pred_check
        %p118 = pneg %p117
      $region18: #{tpu_custom_call.1} parent=5 // pred_check_branch
        %120 = sbr.rel (%p118) target = $region20
      $region19: #{tpu_custom_call.1} parent=5 // pred_region
        // Predicated region
        $region21: #{tpu_custom_call.1} parent=19 // pred_check
          %p121 = pneg %p35
        $region22: #{tpu_custom_call.1} parent=19 // pred_check_branch
          %123 = sbr.rel (%p121) target = $region24
        $region23: #{tpu_custom_call.1} parent=19 // pred_region
          %s124 = sand.u32 %s25, 1
          %s125 = scalar_lea.sflag [#allocation3], %s124
          %s126 = sand.u32 %s25, 1
          %s127 = smul.addr %s126, 128
          %s128 = scalar_lea.vmem [#allocation2], %s127
          %s129 = smul.u32 16, %s15
          %131 = vsyncadd %s125, 0
          %s132 = smul.addr %s129, 8
          %s133 = scalar_lea.hbm %s0, %s132
          %s134 = sshll.u32 %s133, 4
          %s135 = int_to_ptr.hbm [resolvable:$true] %s134
          %s136 = sshll.u32 %s128, 4
          %s137 = int_to_ptr.vmem [resolvable:$true] %s136
          %142 = dma.hbm_to_vmem [thread:$0]  %s135, 2048, %s137, %s125, 128, 128, 8
        $region24: #{tpu_custom_call.1} parent=19 // pred_fallthru
          _
      $region20: #{tpu_custom_call.1} parent=5 // pred_fallthru
        _
      %p143 = scmp.le.s32.totalorder 1, %s15
      %p144 = scmp.lt.s32.totalorder %s15, 5
      %p145 = pnand %p143, %p144
      %p146 = pneg %p145
      // Predicated region
      $region25: #{tpu_custom_call.1} parent=5 // pred_check
        _
      $region26: #{tpu_custom_call.1} parent=5 // pred_check_branch
        %148 = sbr.rel (%p145) target = $region28
      $region27: #{tpu_custom_call.1} parent=5 // pred_region
        %s149 = ssub.s32 %s15, 1
        %s150 = sand.u32 %s28, 1
        %s151 = scalar_lea.sflag [#allocation3], %s150
        %s152 = sand.u32 %s28, 1
        %s153 = smul.addr %s152, 128
        %s154 = scalar_lea.vmem [#allocation2], %s153
        // Predicated region
        $region29: #{tpu_custom_call.1} parent=27 // pred_check
          %p155 = pneg %p41
        $region30: #{tpu_custom_call.1} parent=27 // pred_check_branch
          %157 = sbr.rel (%p155) target = $region32
        $region31: #{tpu_custom_call.1} parent=27 // pred_region
          %159 = dma.done %s151, 2048
        $region32: #{tpu_custom_call.1} parent=27 // pred_fallthru
          _
        // Predicated region
        $region33: #{tpu_custom_call.1} parent=27 // pred_check
          %p160 = pneg %p62
        $region34: #{tpu_custom_call.1} parent=27 // pred_check_branch
          %162 = sbr.rel (%p160) target = $region36
        $region35: #{tpu_custom_call.1} parent=27 // pred_region
          %164 = dma.done [#allocation6], 2048
        $region36: #{tpu_custom_call.1} parent=27 // pred_fallthru
          _
        %s165 = sand.u32 %s28, 1
        %s166 = scalar_lea.sflag [#allocation3], %s165
        %s167 = sand.u32 %s28, 1
        %s168 = smul.addr %s167, 128
        %s169 = scalar_lea.vmem [#allocation2], %s168
        %p170 = pneg %p41
        %p171 = pneg %p38
        %p172 = pneg %p62
        %p173 = pneg %p59
        %p174 = pneg %p88
        %p175 = pneg %p85
        %s176 = sand.u32 %s75, 1
        %s177 = scalar_lea.sflag [#allocation4], %s176
        %s178 = sand.u32 %s75, 1
        %s179 = smul.addr %s178, 64
        %s180 = scalar_lea.vmem [#allocation7], %s179
        %s181 = smul.u32 16, %s20
        %s182 = smul.u32 16, %s20
        %v183 = vld [vmem:[%s154] sm:$0xff]
        %v184 = vld [vmem:[%s154 + $0x8] sm:$0xff]
        %v185 = vld [vmem:[%s154 + $0x10] sm:$0xff]
        %v186 = vld [vmem:[%s154 + $0x18] sm:$0xff]
        %v187 = vld [vmem:[%s154 + $0x20] sm:$0xff]
        %v188 = vld [vmem:[%s154 + $0x28] sm:$0xff]
        %v189 = vld [vmem:[%s154 + $0x30] sm:$0xff]
        %v190 = vld [vmem:[%s154 + $0x38] sm:$0xff]
        %v191 = vld [vmem:[%s154 + $0x40] sm:$0xff]
        %v192 = vld [vmem:[%s154 + $0x48] sm:$0xff]
        %v193 = vld [vmem:[%s154 + $0x50] sm:$0xff]
        %v194 = vld [vmem:[%s154 + $0x58] sm:$0xff]
        %v195 = vld [vmem:[%s154 + $0x60] sm:$0xff]
        %v196 = vld [vmem:[%s154 + $0x68] sm:$0xff]
        %v197 = vld [vmem:[%s154 + $0x70] sm:$0xff]
        %v198 = vld [vmem:[%s154 + $0x78] sm:$0xff]
        %v199 = vlaneseq
        %v200 = vand.u32 %v199, 127
        %vm201 = vcmp.lt.s32.totalorder %v200, 8
        %v202 = vsel %vm201, 1, 0
        %v203 = vcvt.s32.f32 %v202
        %v204 = vmul.f32 %v183, %v203
        %v205 = vmul.f32 %v184, %v203
        %v206 = vmul.f32 %v185, %v203
        %v207 = vmul.f32 %v186, %v203
        %v208 = vmul.f32 %v187, %v203
        %v209 = vmul.f32 %v188, %v203
        %v210 = vmul.f32 %v189, %v203
        %v211 = vmul.f32 %v190, %v203
        %v212 = vmul.f32 %v191, %v203
        %v213 = vmul.f32 %v192, %v203
        %v214 = vmul.f32 %v193, %v203
        %v215 = vmul.f32 %v194, %v203
        %v216 = vmul.f32 %v195, %v203
        %v217 = vmul.f32 %v196, %v203
        %v218 = vmul.f32 %v197, %v203
        %v219 = vmul.f32 %v198, %v203
        %220 = vadd.xlane.f32.xlu0 %v204
        %v221 = vpop.xlane.xlu0 %220
        %222 = vadd.xlane.f32.xlu0 %v205
        %v223 = vpop.xlane.xlu0 %222
        %224 = vadd.xlane.f32.xlu0 %v206
        %v225 = vpop.xlane.xlu0 %224
        %226 = vadd.xlane.f32.xlu0 %v207
        %v227 = vpop.xlane.xlu0 %226
        %228 = vadd.xlane.f32.xlu0 %v208
        %v229 = vpop.xlane.xlu0 %228
        %230 = vadd.xlane.f32.xlu0 %v209
        %v231 = vpop.xlane.xlu0 %230
        %232 = vadd.xlane.f32.xlu0 %v210
        %v233 = vpop.xlane.xlu0 %232
        %234 = vadd.xlane.f32.xlu0 %v211
        %v235 = vpop.xlane.xlu0 %234
        %236 = vadd.xlane.f32.xlu0 %v212
        %v237 = vpop.xlane.xlu0 %236
        %238 = vadd.xlane.f32.xlu0 %v213
        %v239 = vpop.xlane.xlu0 %238
        %240 = vadd.xlane.f32.xlu0 %v214
        %v241 = vpop.xlane.xlu0 %240
        %242 = vadd.xlane.f32.xlu0 %v215
        %v243 = vpop.xlane.xlu0 %242
        %244 = vadd.xlane.f32.xlu0 %v216
        %v245 = vpop.xlane.xlu0 %244
        %246 = vadd.xlane.f32.xlu0 %v217
        %v247 = vpop.xlane.xlu0 %246
        %248 = vadd.xlane.f32.xlu0 %v218
        %v249 = vpop.xlane.xlu0 %248
        %250 = vadd.xlane.f32.xlu0 %v219
        %v251 = vpop.xlane.xlu0 %250
        %v252 = vmul.f32 %v221, 0.125
        %v253 = vmul.f32 %v223, 0.125
        %v254 = vmul.f32 %v225, 0.125
        %v255 = vmul.f32 %v227, 0.125
        %v256 = vmul.f32 %v229, 0.125
        %v257 = vmul.f32 %v231, 0.125
        %v258 = vmul.f32 %v233, 0.125
        %v259 = vmul.f32 %v235, 0.125
        %v260 = vmul.f32 %v237, 0.125
        %v261 = vmul.f32 %v239, 0.125
        %v262 = vmul.f32 %v241, 0.125
        %v263 = vmul.f32 %v243, 0.125
        %v264 = vmul.f32 %v245, 0.125
        %v265 = vmul.f32 %v247, 0.125
        %v266 = vmul.f32 %v249, 0.125
        %v267 = vmul.f32 %v251, 0.125
        %v268 = vsub.f32 %v183, %v252
        %v269 = vsub.f32 %v184, %v253
        %v270 = vsub.f32 %v185, %v254
        %v271 = vsub.f32 %v186, %v255
        %v272 = vsub.f32 %v187, %v256
        %v273 = vsub.f32 %v188, %v257
        %v274 = vsub.f32 %v189, %v258
        %v275 = vsub.f32 %v190, %v259
        %v276 = vsub.f32 %v191, %v260
        %v277 = vsub.f32 %v192, %v261
        %v278 = vsub.f32 %v193, %v262
        %v279 = vsub.f32 %v194, %v263
        %v280 = vsub.f32 %v195, %v264
        %v281 = vsub.f32 %v196, %v265
        %v282 = vsub.f32 %v197, %v266
        %v283 = vsub.f32 %v198, %v267
        %v284 = vmul.f32 %v268, %v203
        %v285 = vmul.f32 %v269, %v203
        %v286 = vmul.f32 %v270, %v203
        %v287 = vmul.f32 %v271, %v203
        %v288 = vmul.f32 %v272, %v203
        %v289 = vmul.f32 %v273, %v203
        %v290 = vmul.f32 %v274, %v203
        %v291 = vmul.f32 %v275, %v203
        %v292 = vmul.f32 %v276, %v203
        %v293 = vmul.f32 %v277, %v203
        %v294 = vmul.f32 %v278, %v203
        %v295 = vmul.f32 %v279, %v203
        %v296 = vmul.f32 %v280, %v203
        %v297 = vmul.f32 %v281, %v203
        %v298 = vmul.f32 %v282, %v203
        %v299 = vmul.f32 %v283, %v203
        %v300 = vmul.f32 %v284, %v284
        %v301 = vmul.f32 %v285, %v285
        %v302 = vmul.f32 %v286, %v286
        %v303 = vmul.f32 %v287, %v287
        %v304 = vmul.f32 %v288, %v288
        %v305 = vmul.f32 %v289, %v289
        %v306 = vmul.f32 %v290, %v290
        %v307 = vmul.f32 %v291, %v291
        %v308 = vmul.f32 %v292, %v292
        %v309 = vmul.f32 %v293, %v293
        %v310 = vmul.f32 %v294, %v294
        %v311 = vmul.f32 %v295, %v295
        %v312 = vmul.f32 %v296, %v296
        %v313 = vmul.f32 %v297, %v297
        %v314 = vmul.f32 %v298, %v298
        %v315 = vmul.f32 %v299, %v299
        %316 = vadd.xlane.f32.xlu0 %v300
        %v317 = vpop.xlane.xlu0 %316
        %318 = vadd.xlane.f32.xlu0 %v301
        %v319 = vpop.xlane.xlu0 %318
        %320 = vadd.xlane.f32.xlu0 %v302
        %v321 = vpop.xlane.xlu0 %320
        %322 = vadd.xlane.f32.xlu0 %v303
        %v323 = vpop.xlane.xlu0 %322
        %324 = vadd.xlane.f32.xlu0 %v304
        %v325 = vpop.xlane.xlu0 %324
        %326 = vadd.xlane.f32.xlu0 %v305
        %v327 = vpop.xlane.xlu0 %326
        %328 = vadd.xlane.f32.xlu0 %v306
        %v329 = vpop.xlane.xlu0 %328
        %330 = vadd.xlane.f32.xlu0 %v307
        %v331 = vpop.xlane.xlu0 %330
        %332 = vadd.xlane.f32.xlu0 %v308
        %v333 = vpop.xlane.xlu0 %332
        %334 = vadd.xlane.f32.xlu0 %v309
        %v335 = vpop.xlane.xlu0 %334
        %336 = vadd.xlane.f32.xlu0 %v310
        %v337 = vpop.xlane.xlu0 %336
        %338 = vadd.xlane.f32.xlu0 %v311
        %v339 = vpop.xlane.xlu0 %338
        %340 = vadd.xlane.f32.xlu0 %v312
        %v341 = vpop.xlane.xlu0 %340
        %342 = vadd.xlane.f32.xlu0 %v313
        %v343 = vpop.xlane.xlu0 %342
        %344 = vadd.xlane.f32.xlu0 %v314
        %v345 = vpop.xlane.xlu0 %344
        %346 = vadd.xlane.f32.xlu0 %v315
        %v347 = vpop.xlane.xlu0 %346
        %v348 = vmul.f32 %v317, 0.125
        %v349 = vmul.f32 %v319, 0.125
        %v350 = vmul.f32 %v321, 0.125
        %v351 = vmul.f32 %v323, 0.125
        %v352 = vmul.f32 %v325, 0.125
        %v353 = vmul.f32 %v327, 0.125
        %v354 = vmul.f32 %v329, 0.125
        %v355 = vmul.f32 %v331, 0.125
        %v356 = vmul.f32 %v333, 0.125
        %v357 = vmul.f32 %v335, 0.125
        %v358 = vmul.f32 %v337, 0.125
        %v359 = vmul.f32 %v339, 0.125
        %v360 = vmul.f32 %v341, 0.125
        %v361 = vmul.f32 %v343, 0.125
        %v362 = vmul.f32 %v345, 0.125
        %v363 = vmul.f32 %v347, 0.125
        %v364 = vadd.f32 %v348, 1e-05
        %v365 = vadd.f32 %v349, 1e-05
        %v366 = vadd.f32 %v350, 1e-05
        %v367 = vadd.f32 %v351, 1e-05
        %v368 = vadd.f32 %v352, 1e-05
        %v369 = vadd.f32 %v353, 1e-05
        %v370 = vadd.f32 %v354, 1e-05
        %v371 = vadd.f32 %v355, 1e-05
        %v372 = vadd.f32 %v356, 1e-05
        %v373 = vadd.f32 %v357, 1e-05
        %v374 = vadd.f32 %v358, 1e-05
        %v375 = vadd.f32 %v359, 1e-05
        %v376 = vadd.f32 %v360, 1e-05
        %v377 = vadd.f32 %v361, 1e-05
        %v378 = vadd.f32 %v362, 1e-05
        %v379 = vadd.f32 %v363, 1e-05
        %v380 = vrsqrt.pop %v364
        %v381 = vmul.f32 %v380, %v364
        %v382 = vmul.f32 %v381, %v380
        %v383 = vmul.f32 0.5, %v382
        %v384 = vsub.f32 1.5, %v383
        %v385 = vmul.f32 %v380, %v384
        %vm386 = vweird.f32 %v364
        %vm387 = vweird.f32 %v380
        %vm388 = vmor %vm386, %vm387
        %v389 = vsel %vm388, %v380, %v385
        %v390 = vrsqrt.pop %v365
        %v391 = vmul.f32 %v390, %v365
        %v392 = vmul.f32 %v391, %v390
        %v393 = vmul.f32 0.5, %v392
        %v394 = vsub.f32 1.5, %v393
        %v395 = vmul.f32 %v390, %v394
        %vm396 = vweird.f32 %v365
        %vm397 = vweird.f32 %v390
        %vm398 = vmor %vm396, %vm397
        %v399 = vsel %vm398, %v390, %v395
        %v400 = vrsqrt.pop %v366
        %v401 = vmul.f32 %v400, %v366
        %v402 = vmul.f32 %v401, %v400
        %v403 = vmul.f32 0.5, %v402
        %v404 = vsub.f32 1.5, %v403
        %v405 = vmul.f32 %v400, %v404
        %vm406 = vweird.f32 %v366
        %vm407 = vweird.f32 %v400
        %vm408 = vmor %vm406, %vm407
        %v409 = vsel %vm408, %v400, %v405
        %v410 = vrsqrt.pop %v367
        %v411 = vmul.f32 %v410, %v367
        %v412 = vmul.f32 %v411, %v410
        %v413 = vmul.f32 0.5, %v412
        %v414 = vsub.f32 1.5, %v413
        %v415 = vmul.f32 %v410, %v414
        %vm416 = vweird.f32 %v367
        %vm417 = vweird.f32 %v410
        %vm418 = vmor %vm416, %vm417
        %v419 = vsel %vm418, %v410, %v415
        %v420 = vrsqrt.pop %v368
        %v421 = vmul.f32 %v420, %v368
        %v422 = vmul.f32 %v421, %v420
        %v423 = vmul.f32 0.5, %v422
        %v424 = vsub.f32 1.5, %v423
        %v425 = vmul.f32 %v420, %v424
        %vm426 = vweird.f32 %v368
        %vm427 = vweird.f32 %v420
        %vm428 = vmor %vm426, %vm427
        %v429 = vsel %vm428, %v420, %v425
        %v430 = vrsqrt.pop %v369
        %v431 = vmul.f32 %v430, %v369
        %v432 = vmul.f32 %v431, %v430
        %v433 = vmul.f32 0.5, %v432
        %v434 = vsub.f32 1.5, %v433
        %v435 = vmul.f32 %v430, %v434
        %vm436 = vweird.f32 %v369
        %vm437 = vweird.f32 %v430
        %vm438 = vmor %vm436, %vm437
        %v439 = vsel %vm438, %v430, %v435
        %v440 = vrsqrt.pop %v370
        %v441 = vmul.f32 %v440, %v370
        %v442 = vmul.f32 %v441, %v440
        %v443 = vmul.f32 0.5, %v442
        %v444 = vsub.f32 1.5, %v443
        %v445 = vmul.f32 %v440, %v444
        %vm446 = vweird.f32 %v370
        %vm447 = vweird.f32 %v440
        %vm448 = vmor %vm446, %vm447
        %v449 = vsel %vm448, %v440, %v445
        %v450 = vrsqrt.pop %v371
        %v451 = vmul.f32 %v450, %v371
        %v452 = vmul.f32 %v451, %v450
        %v453 = vmul.f32 0.5, %v452
        %v454 = vsub.f32 1.5, %v453
        %v455 = vmul.f32 %v450, %v454
        %vm456 = vweird.f32 %v371
        %vm457 = vweird.f32 %v450
        %vm458 = vmor %vm456, %vm457
        %v459 = vsel %vm458, %v450, %v455
        %v460 = vrsqrt.pop %v372
        %v461 = vmul.f32 %v460, %v372
        %v462 = vmul.f32 %v461, %v460
        %v463 = vmul.f32 0.5, %v462
        %v464 = vsub.f32 1.5, %v463
        %v465 = vmul.f32 %v460, %v464
        %vm466 = vweird.f32 %v372
        %vm467 = vweird.f32 %v460
        %vm468 = vmor %vm466, %vm467
        %v469 = vsel %vm468, %v460, %v465
        %v470 = vrsqrt.pop %v373
        %v471 = vmul.f32 %v470, %v373
        %v472 = vmul.f32 %v471, %v470
        %v473 = vmul.f32 0.5, %v472
        %v474 = vsub.f32 1.5, %v473
        %v475 = vmul.f32 %v470, %v474
        %vm476 = vweird.f32 %v373
        %vm477 = vweird.f32 %v470
        %vm478 = vmor %vm476, %vm477
        %v479 = vsel %vm478, %v470, %v475
        %v480 = vrsqrt.pop %v374
        %v481 = vmul.f32 %v480, %v374
        %v482 = vmul.f32 %v481, %v480
        %v483 = vmul.f32 0.5, %v482
        %v484 = vsub.f32 1.5, %v483
        %v485 = vmul.f32 %v480, %v484
        %vm486 = vweird.f32 %v374
        %vm487 = vweird.f32 %v480
        %vm488 = vmor %vm486, %vm487
        %v489 = vsel %vm488, %v480, %v485
        %v490 = vrsqrt.pop %v375
        %v491 = vmul.f32 %v490, %v375
        %v492 = vmul.f32 %v491, %v490
        %v493 = vmul.f32 0.5, %v492
        %v494 = vsub.f32 1.5, %v493
        %v495 = vmul.f32 %v490, %v494
        %vm496 = vweird.f32 %v375
        %vm497 = vweird.f32 %v490
        %vm498 = vmor %vm496, %vm497
        %v499 = vsel %vm498, %v490, %v495
        %v500 = vrsqrt.pop %v376
        %v501 = vmul.f32 %v500, %v376
        %v502 = vmul.f32 %v501, %v500
        %v503 = vmul.f32 0.5, %v502
        %v504 = vsub.f32 1.5, %v503
        %v505 = vmul.f32 %v500, %v504
        %vm506 = vweird.f32 %v376
        %vm507 = vweird.f32 %v500
        %vm508 = vmor %vm506, %vm507
        %v509 = vsel %vm508, %v500, %v505
        %v510 = vrsqrt.pop %v377
        %v511 = vmul.f32 %v510, %v377
        %v512 = vmul.f32 %v511, %v510
        %v513 = vmul.f32 0.5, %v512
        %v514 = vsub.f32 1.5, %v513
        %v515 = vmul.f32 %v510, %v514
        %vm516 = vweird.f32 %v377
        %vm517 = vweird.f32 %v510
        %vm518 = vmor %vm516, %vm517
        %v519 = vsel %vm518, %v510, %v515
        %v520 = vrsqrt.pop %v378
        %v521 = vmul.f32 %v520, %v378
        %v522 = vmul.f32 %v521, %v520
        %v523 = vmul.f32 0.5, %v522
        %v524 = vsub.f32 1.5, %v523
        %v525 = vmul.f32 %v520, %v524
        %vm526 = vweird.f32 %v378
        %vm527 = vweird.f32 %v520
        %vm528 = vmor %vm526, %vm527
        %v529 = vsel %vm528, %v520, %v525
        %v530 = vrsqrt.pop %v379
        %v531 = vmul.f32 %v530, %v379
        %v532 = vmul.f32 %v531, %v530
        %v533 = vmul.f32 0.5, %v532
        %v534 = vsub.f32 1.5, %v533
        %v535 = vmul.f32 %v530, %v534
        %vm536 = vweird.f32 %v379
        %vm537 = vweird.f32 %v530
        %vm538 = vmor %vm536, %vm537
        %v539 = vsel %vm538, %v530, %v535
        %v540 = vmul.f32 %v284, %v389
        %v541 = vmul.f32 %v285, %v399
        %v542 = vmul.f32 %v286, %v409
        %v543 = vmul.f32 %v287, %v419
        %v544 = vmul.f32 %v288, %v429
        %v545 = vmul.f32 %v289, %v439
        %v546 = vmul.f32 %v290, %v449
        %v547 = vmul.f32 %v291, %v459
        %v548 = vmul.f32 %v292, %v469
        %v549 = vmul.f32 %v293, %v479
        %v550 = vmul.f32 %v294, %v489
        %v551 = vmul.f32 %v295, %v499
        %v552 = vmul.f32 %v296, %v509
        %v553 = vmul.f32 %v297, %v519
        %v554 = vmul.f32 %v298, %v529
        %v555 = vmul.f32 %v299, %v539
        %v556 = vld [vmem:[#allocation5] sm:$0xff]
        %v557 = vld [vmem:[#allocation5 + $0x8] sm:$0xff]
        %v558 = vld [vmem:[#allocation5 + $0x10] sm:$0xff]
        %v559 = vld [vmem:[#allocation5 + $0x18] sm:$0xff]
        %v560 = vld [vmem:[#allocation5 + $0x20] sm:$0xff]
        %v561 = vld [vmem:[#allocation5 + $0x28] sm:$0xff]
        %v562 = vld [vmem:[#allocation5 + $0x30] sm:$0xff]
        %v563 = vld [vmem:[#allocation5 + $0x38] sm:$0xff]
        %v564 = vld [vmem:[#allocation5 + $0x40] sm:$0xff]
        %v565 = vld [vmem:[#allocation5 + $0x48] sm:$0xff]
        %v566 = vld [vmem:[#allocation5 + $0x50] sm:$0xff]
        %v567 = vld [vmem:[#allocation5 + $0x58] sm:$0xff]
        %v568 = vld [vmem:[#allocation5 + $0x60] sm:$0xff]
        %v569 = vld [vmem:[#allocation5 + $0x68] sm:$0xff]
        %v570 = vld [vmem:[#allocation5 + $0x70] sm:$0xff]
        %v571 = vld [vmem:[#allocation5 + $0x78] sm:$0xff]
        %572 = vmatpush.msra.mxu0 %v571
        %573 = vmatpush.msra.mxu0 %v570
        %574 = vmatpush.msra.mxu0 %v569
        %575 = vmatpush.msra.mxu0 %v568
        %576 = vmatpush.msra.mxu0 %v567
        %577 = vmatpush.msra.mxu0 %v566
        %578 = vmatpush.msra.mxu0 %v565
        %579 = vmatpush.msra.mxu0 %v564
        %580 = vmatpush.msra.mxu0 %v563
        %581 = vmatpush.msra.mxu0 %v562
        %582 = vmatpush.msra.mxu0 %v561
        %583 = vmatpush.msra.mxu0 %v560
        %584 = vmatpush.msra.mxu0 %v559
        %585 = vmatpush.msra.mxu0 %v558
        %586 = vmatpush.msra.mxu0 %v557
        %587 = vmatpush.msra.mxu0 %v556
        %588 = vmatmul.f32.gmra.mxu0 %v540
        %v589 = vpop.f32.mrf.mxu0
        %v590 = vadd.f32 0.0, %v589
        %591 = vmatmul.f32.gmra.mxu0 %v541
        %v592 = vpop.f32.mrf.mxu0
        %v593 = vadd.f32 0.0, %v592
        %594 = vmatmul.f32.gmra.mxu0 %v542
        %v595 = vpop.f32.mrf.mxu0
        %v596 = vadd.f32 0.0, %v595
        %597 = vmatmul.f32.gmra.mxu0 %v543
        %v598 = vpop.f32.mrf.mxu0
        %v599 = vadd.f32 0.0, %v598
        %600 = vmatmul.f32.gmra.mxu0 %v544
        %v601 = vpop.f32.mrf.mxu0
        %v602 = vadd.f32 0.0, %v601
        %603 = vmatmul.f32.gmra.mxu0 %v545
        %v604 = vpop.f32.mrf.mxu0
        %v605 = vadd.f32 0.0, %v604
        %606 = vmatmul.f32.gmra.mxu0 %v546
        %v607 = vpop.f32.mrf.mxu0
        %v608 = vadd.f32 0.0, %v607
        %609 = vmatmul.f32.gmra.mxu0 %v547
        %v610 = vpop.f32.mrf.mxu0
        %v611 = vadd.f32 0.0, %v610
        %612 = vmatmul.f32.gmra.mxu0 %v548
        %v613 = vpop.f32.mrf.mxu0
        %v614 = vadd.f32 0.0, %v613
        %615 = vmatmul.f32.gmra.mxu0 %v549
        %v616 = vpop.f32.mrf.mxu0
        %v617 = vadd.f32 0.0, %v616
        %618 = vmatmul.f32.gmra.mxu0 %v550
        %v619 = vpop.f32.mrf.mxu0
        %v620 = vadd.f32 0.0, %v619
        %621 = vmatmul.f32.gmra.mxu0 %v551
        %v622 = vpop.f32.mrf.mxu0
        %v623 = vadd.f32 0.0, %v622
        %624 = vmatmul.f32.gmra.mxu0 %v552
        %v625 = vpop.f32.mrf.mxu0
        %v626 = vadd.f32 0.0, %v625
        %627 = vmatmul.f32.gmra.mxu0 %v553
        %v628 = vpop.f32.mrf.mxu0
        %v629 = vadd.f32 0.0, %v628
        %630 = vmatmul.f32.gmra.mxu0 %v554
        %v631 = vpop.f32.mrf.mxu0
        %v632 = vadd.f32 0.0, %v631
        %633 = vmatmul.f32.gmra.mxu0 %v555
        %v634 = vpop.f32.mrf.mxu0
        %v635 = vadd.f32 0.0, %v634
        %636 = vdwg.mxu0
        %v637 = vpack.c.bf16 %v590, %v590
        %v638 = vpack.c.bf16 %v593, %v593
        %v639 = vpack.c.bf16 %v596, %v596
        %v640 = vpack.c.bf16 %v599, %v599
        %v641 = vpack.c.bf16 %v602, %v602
        %v642 = vpack.c.bf16 %v605, %v605
        %v643 = vpack.c.bf16 %v608, %v608
        %v644 = vpack.c.bf16 %v611, %v611
        %v645 = vpack.c.bf16 %v614, %v614
        %v646 = vpack.c.bf16 %v617, %v617
        %v647 = vpack.c.bf16 %v620, %v620
        %v648 = vpack.c.bf16 %v623, %v623
        %v649 = vpack.c.bf16 %v626, %v626
        %v650 = vpack.c.bf16 %v629, %v629
        %v651 = vpack.c.bf16 %v632, %v632
        %v652 = vpack.c.bf16 %v635, %v635
        %653 = vst [vmem:[%s180] sm:$0xf] %v637
        %654 = vst [vmem:[%s180 + $0x4] sm:$0xf] %v638
        %655 = vst [vmem:[%s180 + $0x8] sm:$0xf] %v639
        %656 = vst [vmem:[%s180 + $0xc] sm:$0xf] %v640
        %657 = vst [vmem:[%s180 + $0x10] sm:$0xf] %v641
        %658 = vst [vmem:[%s180 + $0x14] sm:$0xf] %v642
        %659 = vst [vmem:[%s180 + $0x18] sm:$0xf] %v643
        %660 = vst [vmem:[%s180 + $0x1c] sm:$0xf] %v644
        %661 = vst [vmem:[%s180 + $0x20] sm:$0xf] %v645
        %662 = vst [vmem:[%s180 + $0x24] sm:$0xf] %v646
        %663 = vst [vmem:[%s180 + $0x28] sm:$0xf] %v647
        %664 = vst [vmem:[%s180 + $0x2c] sm:$0xf] %v648
        %665 = vst [vmem:[%s180 + $0x30] sm:$0xf] %v649
        %666 = vst [vmem:[%s180 + $0x34] sm:$0xf] %v650
        %667 = vst [vmem:[%s180 + $0x38] sm:$0xf] %v651
        %668 = vst [vmem:[%s180 + $0x3c] sm:$0xf] %v652
        %s669 = sand.u32 %s75, 1
        %s670 = scalar_lea.sflag [#allocation4], %s669
        %s671 = sand.u32 %s75, 1
        %s672 = smul.addr %s671, 64
        %s673 = scalar_lea.vmem [#allocation7], %s672
        // Predicated region
        $region37: #{tpu_custom_call.1} parent=27 // pred_check
          %p674 = pneg %p85
        $region38: #{tpu_custom_call.1} parent=27 // pred_check_branch
          %676 = sbr.rel (%p674) target = $region40
        $region39: #{tpu_custom_call.1} parent=27 // pred_region
          %s677 = smul.u32 16, %s20
          %679 = vsyncadd %s670, 0
          %s680 = smul.addr %s677, 4
          %s681 = scalar_lea.hbm %s2, %s680
          %s682 = sshll.u32 %s673, 4
          %s683 = int_to_ptr.vmem [resolvable:$true] %s682
          %s684 = sshll.u32 %s681, 4
          %s685 = int_to_ptr.hbm [resolvable:$true] %s684
          %690 = dma.vmem_to_hbm [thread:$0]  %s683, 1024, %s685, %s670, 64, 64, 4
        $region40: #{tpu_custom_call.1} parent=27 // pred_fallthru
          _
      $region28: #{tpu_custom_call.1} parent=5 // pred_fallthru
        _
      %p691 = scmp.le.s32.totalorder 2, %s15
      // Predicated region
      $region41: #{tpu_custom_call.1} parent=5 // pred_check
        %p692 = pneg %p691
      $region42: #{tpu_custom_call.1} parent=5 // pred_check_branch
        %694 = sbr.rel (%p692) target = $region44
      $region43: #{tpu_custom_call.1} parent=5 // pred_region
        %s695 = ssub.s32 %s15, 2
        // Predicated region
        $region45: #{tpu_custom_call.1} parent=43 // pred_check
          %p696 = pneg %p91
        $region46: #{tpu_custom_call.1} parent=43 // pred_check_branch
          %698 = sbr.rel (%p696) target = $region48
        $region47: #{tpu_custom_call.1} parent=43 // pred_region
          %s699 = sand.u32 %s76, 1
          %s700 = scalar_lea.sflag [#allocation4], %s699
          %s701 = sand.u32 %s76, 1
          %s702 = smul.addr %s701, 64
          %s703 = scalar_lea.vmem [#allocation7], %s702
          %705 = dma.done %s700, 1024
        $region48: #{tpu_custom_call.1} parent=43 // pred_fallthru
          _
      $region44: #{tpu_custom_call.1} parent=5 // pred_fallthru
        _
    $region6: #{tpu_custom_call.1} parent=1 // loop_footer
      %s19 = sadd.s32 1, %s15
    $region7: #{tpu_custom_call.1} parent=1 // loop_footer_branch
      %14 = sbr.rel target = $region3
    $region8: #{tpu_custom_call.1} parent=1 // loop_exit
      _
    %706 = vsyncpa [#allocation3], 1
    %s707 = scalar_lea.sflag [#allocation3], 1
    %708 = vsyncpa %s707, 1
    %709 = vsyncpa [#allocation6], 1
    %710 = vsyncpa [#allocation4], 1
    %s711 = scalar_lea.sflag [#allocation4], 1
    %712 = vsyncpa %s711, 1

</llo_original>
